<compile_context>
chip_gen: v6e
topology: v6e:2x2x1
jax: 0.10.0
libtpu: 0.0.40
codegen_flags: <defaults>
</compile_context>

<pallas_src>
import functools

import jax
import jax.numpy as jnp
from jax.experimental import pallas as pl
from jax.experimental.pallas import tpu as pltpu

EPS = 1e-5
LANE = 128                      # TPU lane width (last-dim vreg width)
PREFERRED_BN = 512              # preferred output-feature tile width (>=1 MiB DMAs)
MAX_BN = 1024                   # never tile wider than this


def _round_up(x, m):
    return (x + m - 1) // m * m


@functools.lru_cache(maxsize=1)
def _tpu_config():
    """Generation-aware VMEM limit / fused-path threshold / tile preferences."""
    try:
        vmem_cap = int(pltpu.get_tpu_info().vmem_capacity_bytes)
    except Exception:
        vmem_cap = 64 * 1024 * 1024          # conservative fallback (v7x-class)
    small_vmem = vmem_cap <= 64 * 1024 * 1024   # v7x-class: 64 MiB/TC, 2 TCs/chip
    return {
        "vmem_limit": min(vmem_cap * 3 // 4, 112 * 1024 * 1024),
        # On v7x keep the fused (gridless, single-TC) path only for tiny models so
        # the 'parallel' tiled path can use both TensorCores; v5e/v6e (1 TC,
        # 128 MiB VMEM) keep mid-size D fully fused (skips the hn HBM round trip).
        "fused_budget": (8 if small_vmem else 40) * 1024 * 1024,
        "prefer_even_tiles": small_vmem,      # balance n-tiles across 2 TCs
    }


def _pick_bn(dp, itemsize, cfg):
    """Output-feature tile width: multiple of 128 dividing dp, prefer >=512 and
    (on 2-TC chips) an even tile count; double-buffered weight tile <= vmem/2."""
    max_tile_bytes = cfg["vmem_limit"] // 2
    hard_cap = max(LANE, (max_tile_bytes // (2 * dp * itemsize)) // LANE * LANE)
    cap = min(dp, MAX_BN, hard_cap)
    cands = [t for t in range(LANE, cap + 1, LANE) if dp % t == 0] or [LANE]
    big = [t for t in cands if t >= PREFERRED_BN] or cands
    if cfg["prefer_even_tiles"]:
        even = [t for t in big if (dp // t) % 2 == 0]
        if even:
            big = even
    return max(big)


# ----------------------------- kernels --------------------------------------

def decoder_fused_kernel(z_ref, w1t_ref, b1_ref, g1_ref, be1_ref, w2t_ref, b2_ref, o_ref):
    """Single-block fused path (small D): h/hn stay in vregs, one final store."""
    h = jnp.dot(z_ref[...], w1t_ref[...], preferred_element_type=jnp.float32)
    h = jnp.maximum(h + b1_ref[...], 0.0)                         # fc1 + ReLU (f32)

    mean = jnp.mean(h, axis=0, keepdims=True)                     # full-batch stats
    var = jnp.mean(jnp.square(h - mean), axis=0, keepdims=True)   # biased (train mode)
    scale = g1_ref[...] * jax.lax.rsqrt(var + EPS)                # gamma folded into inv_std (EUP)
    shift = be1_ref[...] - mean * scale
    hn = (h * scale + shift).astype(w2t_ref.dtype)                # one cast to matmul dtype

    y = jnp.dot(hn, w2t_ref[...], preferred_element_type=jnp.float32)
    o_ref[...] = jnp.maximum(y + b2_ref[...], 0.0).astype(o_ref.dtype)


def fc1_bn_kernel(z_ref, w1t_ref, b1_ref, g1_ref, be1_ref, hn_ref):
    """Tiled fc1 + ReLU + BatchNorm1d.  Grid = (n_tiles,) over output features.
    z_ref is the FULL (B, Dp) activation (constant index_map -> resident in
    VMEM, DMA'd once); the batch is whole, so BN stats are exact."""
    h = jnp.dot(z_ref[...], w1t_ref[...], preferred_element_type=jnp.float32)
    h = jnp.maximum(h + b1_ref[...], 0.0)                         # (B, bn) f32
    mean = jnp.mean(h, axis=0, keepdims=True)                     # full-batch stats
    var = jnp.mean(jnp.square(h - mean), axis=0, keepdims=True)   # biased (train mode)
    scale = g1_ref[...] * jax.lax.rsqrt(var + EPS)                # gamma * inv_std
    shift = be1_ref[...] - mean * scale
    hn_ref[...] = (h * scale + shift).astype(hn_ref.dtype)        # lane-dense store


def fc2_relu_kernel(hn_ref, w2t_ref, b2_ref, o_ref):
    """Tiled fc2 + ReLU.  hn_ref is the FULL (B, Dp) normalized activation."""
    y = jnp.dot(hn_ref[...], w2t_ref[...], preferred_element_type=jnp.float32)
    o_ref[...] = jnp.maximum(y + b2_ref[...], 0.0).astype(o_ref.dtype)


# --------------------------- pallas_call wrappers ----------------------------

def _compiler_params(cfg, with_grid=True):
    if with_grid:
        return pltpu.CompilerParams(
            dimension_semantics=("parallel",),        # v7x: shard n-tiles over 2 TCs
            vmem_limit_bytes=cfg["vmem_limit"])
    return pltpu.CompilerParams(vmem_limit_bytes=cfg["vmem_limit"])


def _fused_call(zp, prep, cfg):
    B, Dp = zp.shape
    vmem = pl.BlockSpec(memory_space=pltpu.MemorySpace.VMEM)
    return pl.pallas_call(
        decoder_fused_kernel,
        out_shape=jax.ShapeDtypeStruct((B, Dp), jnp.float32),
        in_specs=[vmem] * 7,
        out_specs=vmem,
        compiler_params=_compiler_params(cfg, with_grid=False),
    )(zp, prep["w1t"], prep["b1"], prep["g1"], prep["be1"], prep["w2t"], prep["b2"])


def _fc1_bn_call(zp, prep, cfg):
    B, Dp = zp.shape
    bn = _pick_bn(Dp, jnp.dtype(prep["dtype"]).itemsize, cfg)
    row = lambda n: (0, n)
    return pl.pallas_call(
        fc1_bn_kernel,
        out_shape=jax.ShapeDtypeStruct((B, Dp), prep["dtype"]),
        grid_spec=pltpu.PrefetchScalarGridSpec(
            num_scalar_prefetch=0,
            grid=(Dp // bn,),
            in_specs=[
                pl.BlockSpec((B, Dp), lambda n: (0, 0)),     # z: resident, loaded once
                pl.BlockSpec((Dp, bn), row),                 # w1t tile (full-K column slab)
                pl.BlockSpec((1, bn), row),                  # b1
                pl.BlockSpec((1, bn), row),                  # gamma1
                pl.BlockSpec((1, bn), row),                  # beta1
            ],
            out_specs=pl.BlockSpec((B, bn), row),            # hn tile (lane-dense)
        ),
        compiler_params=_compiler_params(cfg),
    )(zp, prep["w1t"], prep["b1"], prep["g1"], prep["be1"])


def _fc2_relu_call(hn, prep, cfg):
    B, Dp = hn.shape
    bn = _pick_bn(Dp, jnp.dtype(prep["dtype"]).itemsize, cfg)
    row = lambda n: (0, n)
    return pl.pallas_call(
        fc2_relu_kernel,
        out_shape=jax.ShapeDtypeStruct((B, Dp), jnp.float32),
        grid_spec=pltpu.PrefetchScalarGridSpec(
            num_scalar_prefetch=0,
            grid=(Dp // bn,),
            in_specs=[
                pl.BlockSpec((B, Dp), lambda n: (0, 0)),     # hn: resident, loaded once
                pl.BlockSpec((Dp, bn), row),                 # w2t tile
                pl.BlockSpec((1, bn), row),                  # b2
            ],
            out_specs=pl.BlockSpec((B, bn), row),
        ),
        compiler_params=_compiler_params(cfg),
    )(hn, prep["w2t"], prep["b2"])


# ------------------------------ host-side API --------------------------------

def _padded_dim(d):
    dp = _round_up(max(d, LANE), LANE)
    if dp > MAX_BN:
        dp = _round_up(dp, PREFERRED_BN)   # guarantee >=512-wide tiles divide Dp
    return dp


def prepare_params(params, compute_dtype=jnp.bfloat16):
    """One-time (outside the hot path) transpose + lane-pad + cast of parameters.
    bf16 weights are the default on every generation (weight-streaming bound);
    BN/ReLU math and MXU accumulation stay f32."""
    D = params["w1"].shape[0]
    Dp = _padded_dim(D)
    pD = Dp - D

    def pad_mat(w):   # (D, D) -> (Dp, Dp), zero padded (provably inert)
        return jnp.pad(w, ((0, pD), (0, pD)))

    def pad_row(v):   # (D,) -> (1, Dp) f32, zero padded
        return jnp.pad(v, (0, pD)).reshape(1, Dp).astype(jnp.float32)

    return {
        "D": D, "Dp": Dp, "dtype": compute_dtype,
        "w1t": pad_mat(params["w1"].T).astype(compute_dtype),   # (in, out)
        "w2t": pad_mat(params["w2"].T).astype(compute_dtype),
        "b1": pad_row(params["b1"]),
        "b2": pad_row(params["b2"]),
        "g1": pad_row(params["gamma1"]),
        "be1": pad_row(params["beta1"]),
    }


def decoder_forward(z, prep, mode="auto"):
    """Decoder forward.  mode: "auto" | "fused" | "tiled"."""
    B, D = z.shape
    assert D == prep["D"], "feature dim mismatch with prepared params"
    Dp, cdt = prep["Dp"], prep["dtype"]
    cfg = _tpu_config()

    if Dp == D:
        zp = z.astype(cdt)                                       # no pad pass needed
    else:
        zp = jnp.pad(z, ((0, 0), (0, Dp - D))).astype(cdt)       # lane-dense (B, Dp)

    itemsize = jnp.dtype(cdt).itemsize
    resident = 2 * Dp * Dp * itemsize + 8 * B * Dp * 4           # weights + activation slack
    use_fused = mode == "fused" or (mode == "auto" and resident <= cfg["fused_budget"])

    if use_fused:
        yp = _fused_call(zp, prep, cfg)
    else:
        # BatchNorm is a full-feature barrier between the two matmuls, so the
        # scalable path materializes the (B, Dp) normalized activations once
        # (tiny vs. the DxD weights) between two tiled matmul kernels.
        hn = _fc1_bn_call(zp, prep, cfg)      # (B, Dp) compute dtype
        yp = _fc2_relu_call(hn, prep, cfg)    # (B, Dp) f32
    return yp if Dp == D else yp[:, :D]


def init_params(key, input_dim):
    """Deterministic init mimicking nn.Linear / nn.BatchNorm1d shapes/defaults."""
    k1, k2, k3, k4 = jax.random.split(key, 4)
    bound = 1.0 / jnp.sqrt(input_dim)
    return {
        "w1": jax.random.uniform(k1, (input_dim, input_dim), jnp.float32, -bound, bound),
        "b1": jax.random.uniform(k2, (input_dim,), jnp.float32, -bound, bound),
        "w2": jax.random.uniform(k3, (input_dim, input_dim), jnp.float32, -bound, bound),
        "b2": jax.random.uniform(k4, (input_dim,), jnp.float32, -bound, bound),
        "gamma1": jnp.ones((input_dim,), jnp.float32),
        "beta1": jnp.zeros((input_dim,), jnp.float32),
    }


def decoder_ref(z, params):
    """Pure f32 JAX reference (PyTorch train-mode forward semantics)."""
    h = jnp.maximum(z @ params["w1"].T + params["b1"], 0.0)
    mean = jnp.mean(h, axis=0, keepdims=True)
    var = jnp.mean((h - mean) ** 2, axis=0, keepdims=True)
    hn = (h - mean) / jnp.sqrt(var + EPS) * params["gamma1"] + params["beta1"]
    return jnp.maximum(hn @ params["w2"].T + params["b2"], 0.0)


def decoder_ref_mixed(z, params, dtype):
    """Same math with the kernel's mixed precision (bf16 matmul in, f32 accum)."""
    h = jnp.dot(z.astype(dtype), params["w1"].T.astype(dtype),
                preferred_element_type=jnp.float32) + params["b1"]
    h = jnp.maximum(h, 0.0)
    mean = jnp.mean(h, axis=0, keepdims=True)
    var = jnp.mean((h - mean) ** 2, axis=0, keepdims=True)
    scale = params["gamma1"] * jax.lax.rsqrt(var + EPS)
    hn = ((h - mean) * scale + params["beta1"]).astype(dtype)
    y = jnp.dot(hn, params["w2"].T.astype(dtype),
                preferred_element_type=jnp.float32) + params["b2"]
    return jnp.maximum(y, 0.0)


if __name__ == "__main__":
    key = jax.random.PRNGKey(0)
    kz, kp, kz2, kp2 = jax.random.split(key, 4)

    # ---- small, spec-sized problem: batch=8, input_dim=32 ----
    B, D = 8, 32
    z = jax.random.normal(kz, (B, D), jnp.float32)
    params = init_params(kp, D)

    # f32 compute path, fused single-block kernel, exact f32 reference.
    out_f32 = jax.block_until_ready(decoder_forward(z, prepare_params(params, jnp.float32)))
    ref_f32 = decoder_ref(z, params)
    assert out_f32.shape == (B, D)
    assert jnp.allclose(out_f32, ref_f32, atol=5e-4, rtol=5e-4), "fused f32 mismatch"

    # f32 compute path forced through the tiled grid, same exact reference.
    out_t32 = jax.block_until_ready(
        decoder_forward(z, prepare_params(params, jnp.float32), mode="tiled"))
    assert jnp.allclose(out_t32, ref_f32, atol=5e-4, rtol=5e-4), "tiled f32 mismatch"

    # bf16 matmul inputs / f32 accumulation (default fast path), checked against
    # a JAX reference applying the same bf16 casts.
    out_b16 = jax.block_until_ready(decoder_forward(z, prepare_params(params, jnp.bfloat16)))
    ref_b16 = decoder_ref_mixed(z, params, jnp.bfloat16)
    assert jnp.allclose(out_b16, ref_b16, atol=1e-2, rtol=1e-2), "fused bf16 mismatch"

    # ---- larger problem exercising the multi-tile parallel grid ----
    B2, D2 = 64, 1024   # Dp=1024 -> bn=512 on 2-TC chips (2 tiles), 512/1024 otherwise
    z2 = jax.random.normal(kz2, (B2, D2), jnp.float32)
    params2 = init_params(kp2, D2)
    out2 = jax.block_until_ready(
        decoder_forward(z2, prepare_params(params2, jnp.bfloat16), mode="tiled"))
    ref2 = decoder_ref_mixed(z2, params2, jnp.bfloat16)
    assert out2.shape == (B2, D2)
    assert jnp.allclose(out2, ref2, atol=1e-2, rtol=1e-2), "tiled bf16 mismatch"

    # TODO(synk): BatchNorm1d running_mean/running_var buffer updates (train-mode
    # side effect) are not materialized; forward math matches PyTorch train mode.
    # TODO(synk): B=1 train-mode BN (var=0) raises in PyTorch; here it silently
    # produces gamma*rsqrt(eps)-scaled outputs.
    print("KERNEL_OK")
</pallas_src>

<mosaic_0001>
module attributes {stable_mosaic.version = 11 : i64} {
  func.func @decoder_fused_kernel(%arg0: memref<8x128xf32, #tpu.memory_space<vmem>>, %arg1: memref<128x128xf32, #tpu.memory_space<vmem>>, %arg2: memref<1x128xf32, #tpu.memory_space<vmem>>, %arg3: memref<1x128xf32, #tpu.memory_space<vmem>>, %arg4: memref<1x128xf32, #tpu.memory_space<vmem>>, %arg5: memref<128x128xf32, #tpu.memory_space<vmem>>, %arg6: memref<1x128xf32, #tpu.memory_space<vmem>>, %arg7: memref<8x128xf32, #tpu.memory_space<vmem>>) attributes {dimension_semantics = [], scalar_prefetch = 0 : i64, scratch_operands = 0 : i64, tpu.core_type = #tpu.core_type<tc>} {
    %c0 = arith.constant 0 : index
    %c0_0 = arith.constant 0 : index
    %0 = vector.load %arg0[%c0, %c0_0] : memref<8x128xf32, #tpu.memory_space<vmem>>, vector<8x128xf32>
    %c0_1 = arith.constant 0 : index
    %c0_2 = arith.constant 0 : index
    %1 = vector.load %arg1[%c0_1, %c0_2] : memref<128x128xf32, #tpu.memory_space<vmem>>, vector<128x128xf32>
    %cst = arith.constant dense<0.000000e+00> : vector<8x128xf32>
    %2 = tpu.matmul %0, %1, %cst {dimension_numbers = #tpu.dot_dimension_numbers<[1], [0], [0], [1], [0, 0, 1, 1], [], []>} : vector<8x128xf32>, vector<128x128xf32>, vector<8x128xf32> -> vector<8x128xf32>
    %c0_3 = arith.constant 0 : index
    %c0_4 = arith.constant 0 : index
    %3 = vector.load %arg2[%c0_3, %c0_4] : memref<1x128xf32, #tpu.memory_space<vmem>>, vector<1x128xf32>
    %4 = vector.broadcast %3 : vector<1x128xf32> to vector<8x128xf32>
    %5 = arith.addf %2, %4 : vector<8x128xf32>
    %cst_5 = arith.constant 0.000000e+00 : f32
    %6 = vector.broadcast %cst_5 : f32 to vector<8x128xf32>
    %7 = arith.maximumf %5, %6 : vector<8x128xf32>
    %cst_6 = arith.constant dense<0.000000e+00> : vector<128xf32>
    %8 = vector.multi_reduction <add>, %7, %cst_6 [0] : vector<8x128xf32> to vector<128xf32>
    %9 = vector.shape_cast %8 : vector<128xf32> to vector<1x128xf32>
    %cst_7 = arith.constant 8.000000e+00 : f32
    %10 = vector.broadcast %cst_7 : f32 to vector<1x128xf32>
    %11 = arith.divf %9, %10 : vector<1x128xf32>
    %12 = vector.broadcast %11 : vector<1x128xf32> to vector<8x128xf32>
    %13 = arith.subf %7, %12 : vector<8x128xf32>
    %14 = arith.mulf %13, %13 : vector<8x128xf32>
    %cst_8 = arith.constant dense<0.000000e+00> : vector<128xf32>
    %15 = vector.multi_reduction <add>, %14, %cst_8 [0] : vector<8x128xf32> to vector<128xf32>
    %16 = vector.shape_cast %15 : vector<128xf32> to vector<1x128xf32>
    %cst_9 = arith.constant 8.000000e+00 : f32
    %17 = vector.broadcast %cst_9 : f32 to vector<1x128xf32>
    %18 = arith.divf %16, %17 : vector<1x128xf32>
    %c0_10 = arith.constant 0 : index
    %c0_11 = arith.constant 0 : index
    %19 = vector.load %arg3[%c0_10, %c0_11] : memref<1x128xf32, #tpu.memory_space<vmem>>, vector<1x128xf32>
    %cst_12 = arith.constant 9.99999974E-6 : f32
    %20 = vector.broadcast %cst_12 : f32 to vector<1x128xf32>
    %21 = arith.addf %18, %20 : vector<1x128xf32>
    %22 = math.rsqrt %21 : vector<1x128xf32>
    %23 = arith.mulf %19, %22 : vector<1x128xf32>
    %c0_13 = arith.constant 0 : index
    %c0_14 = arith.constant 0 : index
    %24 = vector.load %arg4[%c0_13, %c0_14] : memref<1x128xf32, #tpu.memory_space<vmem>>, vector<1x128xf32>
    %25 = arith.mulf %11, %23 : vector<1x128xf32>
    %26 = arith.subf %24, %25 : vector<1x128xf32>
    %27 = vector.broadcast %23 : vector<1x128xf32> to vector<8x128xf32>
    %28 = arith.mulf %7, %27 : vector<8x128xf32>
    %29 = vector.broadcast %26 : vector<1x128xf32> to vector<8x128xf32>
    %30 = arith.addf %28, %29 : vector<8x128xf32>
    %c0_15 = arith.constant 0 : index
    %c0_16 = arith.constant 0 : index
    %31 = vector.load %arg5[%c0_15, %c0_16] : memref<128x128xf32, #tpu.memory_space<vmem>>, vector<128x128xf32>
    %cst_17 = arith.constant dense<0.000000e+00> : vector<8x128xf32>
    %32 = tpu.matmul %30, %31, %cst_17 {dimension_numbers = #tpu.dot_dimension_numbers<[1], [0], [0], [1], [0, 0, 1, 1], [], []>} : vector<8x128xf32>, vector<128x128xf32>, vector<8x128xf32> -> vector<8x128xf32>
    %c0_18 = arith.constant 0 : index
    %c0_19 = arith.constant 0 : index
    %33 = vector.load %arg6[%c0_18, %c0_19] : memref<1x128xf32, #tpu.memory_space<vmem>>, vector<1x128xf32>
    %34 = vector.broadcast %33 : vector<1x128xf32> to vector<8x128xf32>
    %35 = arith.addf %32, %34 : vector<8x128xf32>
    %cst_20 = arith.constant 0.000000e+00 : f32
    %36 = vector.broadcast %cst_20 : f32 to vector<8x128xf32>
    %37 = arith.maximumf %35, %36 : vector<8x128xf32>
    %c0_21 = arith.constant 0 : index
    %c0_22 = arith.constant 0 : index
    %38 = vector.load %arg7[%c0_21, %c0_22] : memref<8x128xf32, #tpu.memory_space<vmem>>, vector<8x128xf32>
    tpu.vector_store %arg7[%c0_21, %c0_22], %37 {strides = array<i32>} : memref<8x128xf32, #tpu.memory_space<vmem>>, vector<8x128xf32>,
    return
  }
}

</mosaic_0001>

<llo_original>
// kernel: tpu_custom_call.1
$region0: #{tpu_custom_call.1}
  #allocation0 [shape = 'u32[]', space=smem, size = 0x4, offset = 0x4, fixed_abs, tag = 'smem constant byte address 0x4 - core index']
  #allocation1 [shape = 'u32[144,128]{1,0:T(1,128)}', space=vmem, size = 0x12000, scoped, tag = 'internal scratch']
  %s0 = inlined_call_operand.hbm [shape: f32[8,128], index: 0, kind: input, shape index: {}]
  %s1 = inlined_call_operand.hbm [shape: f32[128,128], index: 1, kind: input, shape index: {}]
  %s2 = inlined_call_operand.vmem [shape: f32[1,128], index: 2, kind: input, shape index: {}]
  %s3 = inlined_call_operand.vmem [shape: f32[1,128], index: 3, kind: input, shape index: {}]
  %s4 = inlined_call_operand.vmem [shape: f32[1,128], index: 4, kind: input, shape index: {}]
  %s5 = inlined_call_operand.hbm [shape: f32[128,128], index: 5, kind: input, shape index: {}]
  %s6 = inlined_call_operand.vmem [shape: f32[1,128], index: 6, kind: input, shape index: {}]
  %s7 = inlined_call_operand.hbm [shape: f32[8,128], index: 7, kind: output, shape index: {}]
  %s8 = sld [smem:[#allocation0]]
  $region50: #{tpu_custom_call.1} parent=0
    _
  %s10 = ssub.s32 1, %s8
  %s11 = scalar_select 0, %s10, %s8
  $region1: #{tpu_custom_call.1} parent=0
    #allocation2 [shape = 'u8[4096]{0}', space=vmem, size = 0x1000, scoped, tag = 'input window, operand 0, single buffered']
    #allocation3 [shape = 's32[1]{0}', space=sflag, size = 0x4, scoped, tag = 'scoped memory for tpu_custom_call.1']
    #allocation4 [shape = 's32[1]{0}', space=sflag, size = 0x4, scoped, tag = 'scoped memory for tpu_custom_call.1']
    #allocation5 [shape = 'u8[65536]{0}', space=vmem, size = 0x10000, scoped, tag = 'input window, operand 1, single buffered']
    #allocation6 [shape = 's32[1]{0}', space=sflag, size = 0x4, scoped, tag = 'scoped memory for tpu_custom_call.1']
    #allocation7 [shape = 'u8[65536]{0}', space=vmem, size = 0x10000, scoped, tag = 'input window, operand 5, single buffered']
    #allocation8 [shape = 'u8[4096]{0}', space=vmem, size = 0x1000, scoped, tag = 'output window, operand 0, single buffered']
    %12 = vsyncpa [#allocation3], 0
    %13 = vsyncpa [#allocation6], 0
    %14 = vsyncpa [#allocation4], 0
    // Predicated region
    $region2: #{tpu_custom_call.1} parent=1 // pred_check
      _
    $region3: #{tpu_custom_call.1} parent=1 // pred_check_branch
      %16 = sbr.rel (0) target = $region5
    $region4: #{tpu_custom_call.1} parent=1 // pred_region
      %s18 = ssub.s32 128, 128
      %19 = vsyncadd [#allocation3], %s18
      %s21 = sshll.u32 [#allocation2], 4
      %s22 = int_to_ptr.vmem [resolvable:$true] %s21
      %24 = dma.hbm_to_vmem [thread:$0]  %s0, 128, %s22, [#allocation3]
    $region5: #{tpu_custom_call.1} parent=1 // pred_fallthru
      _
    // Predicated region
    $region6: #{tpu_custom_call.1} parent=1 // pred_check
      _
    $region7: #{tpu_custom_call.1} parent=1 // pred_check_branch
      %26 = sbr.rel (0) target = $region9
    $region8: #{tpu_custom_call.1} parent=1 // pred_region
      %s28 = ssub.s32 2048, 2048
      %29 = vsyncadd [#allocation6], %s28
      %s30 = sshll.u32 [#allocation5], 4
      %s31 = int_to_ptr.vmem [resolvable:$true] %s30
      %36 = dma.hbm_to_vmem [thread:$0]  %s1, 2048, %s31, [#allocation6], 128, 128, 8
    $region9: #{tpu_custom_call.1} parent=1 // pred_fallthru
      _
    // Predicated region
    $region10: #{tpu_custom_call.1} parent=1 // pred_check
      _
    $region11: #{tpu_custom_call.1} parent=1 // pred_check_branch
      %38 = sbr.rel (0) target = $region13
    $region12: #{tpu_custom_call.1} parent=1 // pred_region
      _
    $region13: #{tpu_custom_call.1} parent=1 // pred_fallthru
      _
    // Predicated region
    $region14: #{tpu_custom_call.1} parent=1 // pred_check
      _
    $region15: #{tpu_custom_call.1} parent=1 // pred_check_branch
      %40 = sbr.rel (0) target = $region17
    $region16: #{tpu_custom_call.1} parent=1 // pred_region
      _
    $region17: #{tpu_custom_call.1} parent=1 // pred_fallthru
      _
    // Predicated region
    $region18: #{tpu_custom_call.1} parent=1 // pred_check
      _
    $region19: #{tpu_custom_call.1} parent=1 // pred_check_branch
      %42 = sbr.rel (0) target = $region21
    $region20: #{tpu_custom_call.1} parent=1 // pred_region
      _
    $region21: #{tpu_custom_call.1} parent=1 // pred_fallthru
      _
    // Predicated region
    $region22: #{tpu_custom_call.1} parent=1 // pred_check
      _
    $region23: #{tpu_custom_call.1} parent=1 // pred_check_branch
      %44 = sbr.rel (0) target = $region25
    $region24: #{tpu_custom_call.1} parent=1 // pred_region
      %s46 = ssub.s32 2048, 2048
      %47 = vsyncadd [#allocation6], %s46
      %s48 = sshll.u32 [#allocation7], 4
      %s49 = int_to_ptr.vmem [resolvable:$true] %s48
      %54 = dma.hbm_to_vmem [thread:$0]  %s5, 2048, %s49, [#allocation6], 128, 128, 8
    $region25: #{tpu_custom_call.1} parent=1 // pred_fallthru
      _
    // Predicated region
    $region26: #{tpu_custom_call.1} parent=1 // pred_check
      _
    $region27: #{tpu_custom_call.1} parent=1 // pred_check_branch
      %56 = sbr.rel (0) target = $region29
    $region28: #{tpu_custom_call.1} parent=1 // pred_region
      _
    $region29: #{tpu_custom_call.1} parent=1 // pred_fallthru
      _
    // Predicated region
    $region30: #{tpu_custom_call.1} parent=1 // pred_check
      _
    $region31: #{tpu_custom_call.1} parent=1 // pred_check_branch
      %58 = sbr.rel (0) target = $region33
    $region32: #{tpu_custom_call.1} parent=1 // pred_region
      %59 = dma.done [#allocation3], 128
    $region33: #{tpu_custom_call.1} parent=1 // pred_fallthru
      _
    // Predicated region
    $region34: #{tpu_custom_call.1} parent=1 // pred_check
      _
    $region35: #{tpu_custom_call.1} parent=1 // pred_check_branch
      %61 = sbr.rel (0) target = $region37
    $region36: #{tpu_custom_call.1} parent=1 // pred_region
      %62 = dma.done [#allocation6], 2048
    $region37: #{tpu_custom_call.1} parent=1 // pred_fallthru
      _
    // Predicated region
    $region38: #{tpu_custom_call.1} parent=1 // pred_check
      _
    $region39: #{tpu_custom_call.1} parent=1 // pred_check_branch
      %64 = sbr.rel (0) target = $region41
    $region40: #{tpu_custom_call.1} parent=1 // pred_region
      %65 = dma.done [#allocation6], 2048
    $region41: #{tpu_custom_call.1} parent=1 // pred_fallthru
      _
    %v66 = vld [vmem:[#allocation2] sm:$0xff]
    %v67 = vld [vmem:[#allocation5] sm:$0xff]
    %v68 = vld [vmem:[#allocation5 + $0x8] sm:$0xff]
    %v69 = vld [vmem:[#allocation5 + $0x10] sm:$0xff]
    %v70 = vld [vmem:[#allocation5 + $0x18] sm:$0xff]
    %v71 = vld [vmem:[#allocation5 + $0x20] sm:$0xff]
    %v72 = vld [vmem:[#allocation5 + $0x28] sm:$0xff]
    %v73 = vld [vmem:[#allocation5 + $0x30] sm:$0xff]
    %v74 = vld [vmem:[#allocation5 + $0x38] sm:$0xff]
    %v75 = vld [vmem:[#allocation5 + $0x40] sm:$0xff]
    %v76 = vld [vmem:[#allocation5 + $0x48] sm:$0xff]
    %v77 = vld [vmem:[#allocation5 + $0x50] sm:$0xff]
    %v78 = vld [vmem:[#allocation5 + $0x58] sm:$0xff]
    %v79 = vld [vmem:[#allocation5 + $0x60] sm:$0xff]
    %v80 = vld [vmem:[#allocation5 + $0x68] sm:$0xff]
    %v81 = vld [vmem:[#allocation5 + $0x70] sm:$0xff]
    %v82 = vld [vmem:[#allocation5 + $0x78] sm:$0xff]
    %v83 = vld [vmem:[%s2] sm:$0x1]
    %v85 = vlaneseq
    %v86 = vshrl.u32 %v85, 7
    %v87 = vsub.s32 0, %v86
    %v88 = vrot.slane %v83, %v87
    %90 = vmatprep.subr.mxu0 0.0
    %91 = vmatpush1.msra.mxu0 %v82
    %92 = vmatprep.subr.mxu0 0.0
    %93 = vmatpush1.msra.mxu0 %v81
    %94 = vmatprep.subr.mxu0 0.0
    %95 = vmatpush1.msra.mxu0 %v80
    %96 = vmatprep.subr.mxu0 0.0
    %97 = vmatpush1.msra.mxu0 %v79
    %98 = vmatprep.subr.mxu0 0.0
    %99 = vmatpush1.msra.mxu0 %v78
    %100 = vmatprep.subr.mxu0 0.0
    %101 = vmatpush1.msra.mxu0 %v77
    %102 = vmatprep.subr.mxu0 0.0
    %103 = vmatpush1.msra.mxu0 %v76
    %104 = vmatprep.subr.mxu0 0.0
    %105 = vmatpush1.msra.mxu0 %v75
    %106 = vmatprep.subr.mxu0 0.0
    %107 = vmatpush1.msra.mxu0 %v74
    %108 = vmatprep.subr.mxu0 0.0
    %109 = vmatpush1.msra.mxu0 %v73
    %110 = vmatprep.subr.mxu0 0.0
    %111 = vmatpush1.msra.mxu0 %v72
    %112 = vmatprep.subr.mxu0 0.0
    %113 = vmatpush1.msra.mxu0 %v71
    %114 = vmatprep.subr.mxu0 0.0
    %115 = vmatpush1.msra.mxu0 %v70
    %116 = vmatprep.subr.mxu0 0.0
    %117 = vmatpush1.msra.mxu0 %v69
    %118 = vmatprep.subr.mxu0 0.0
    %119 = vmatpush1.msra.mxu0 %v68
    %120 = vmatprep.subr.mxu0 0.0
    %121 = vmatpush1.msra.mxu0 %v67
    %122 = vmatprep.subr.mxu0 0.0
    %123 = vmatpush2.msra.mxu0 0.0
    %124 = vmatprep.subr.mxu0 0.0
    %125 = vmatpush2.msra.mxu0 0.0
    %126 = vmatprep.subr.mxu0 0.0
    %127 = vmatpush2.msra.mxu0 0.0
    %128 = vmatprep.subr.mxu0 0.0
    %129 = vmatpush2.msra.mxu0 0.0
    %130 = vmatprep.subr.mxu0 0.0
    %131 = vmatpush2.msra.mxu0 0.0
    %132 = vmatprep.subr.mxu0 0.0
    %133 = vmatpush2.msra.mxu0 0.0
    %134 = vmatprep.subr.mxu0 0.0
    %135 = vmatpush2.msra.mxu0 0.0
    %136 = vmatprep.subr.mxu0 0.0
    %137 = vmatpush2.msra.mxu0 0.0
    %138 = vmatprep.subr.mxu0 0.0
    %139 = vmatpush2.msra.mxu0 0.0
    %140 = vmatprep.subr.mxu0 0.0
    %141 = vmatpush2.msra.mxu0 0.0
    %142 = vmatprep.subr.mxu0 0.0
    %143 = vmatpush2.msra.mxu0 0.0
    %144 = vmatprep.subr.mxu0 0.0
    %145 = vmatpush2.msra.mxu0 0.0
    %146 = vmatprep.subr.mxu0 0.0
    %147 = vmatpush2.msra.mxu0 0.0
    %148 = vmatprep.subr.mxu0 0.0
    %149 = vmatpush2.msra.mxu0 0.0
    %150 = vmatprep.subr.mxu0 0.0
    %151 = vmatpush2.msra.mxu0 0.0
    %152 = vmatprep.subr.mxu0 0.0
    %153 = vmatpush2.msra.mxu0 0.0
    %154 = vmatprep.mubr.f32.mxu0 0.0
    %155 = vmatmul.mubr.f32.gmra.mxu0 %v66
    %v156 = vpop.f32.mrf.mxu0
    %v157 = vadd.f32 %v88, %v156
    %v158 = vpop.f32.mrf.mxu0
    %159 = vdwg.mxu0
    %v160 = vmax.f32 %v157, 0.0
    %v161 = vrot.slane %v160, 4
    %v162 = vadd.f32 %v160, %v161
    %v163 = vrot.slane %v162, 2
    %v164 = vadd.f32 %v162, %v163
    %v165 = vrot.slane %v164, 1
    %v166 = vadd.f32 %v164, %v165
    %v167 = vrcp.pop 8.0
    %v168 = vmul.f32 %v166, %v167
    %v169 = vsub.f32 %v160, %v168
    %v170 = vmul.f32 %v169, %v169
    %v171 = vrot.slane %v170, 4
    %v172 = vadd.f32 %v170, %v171
    %v173 = vrot.slane %v172, 2
    %v174 = vadd.f32 %v172, %v173
    %v175 = vrot.slane %v174, 1
    %v176 = vadd.f32 %v174, %v175
    %v177 = vmul.f32 %v176, %v167
    %v178 = vld [vmem:[%s3] sm:$0x1]
    %v179 = vadd.f32 %v177, 1e-05
    %v180 = vrsqrt.pop %v179
    %v181 = vmul.f32 %v178, %v180
    %v182 = vld [vmem:[%s4] sm:$0x1]
    %v183 = vmul.f32 %v168, %v181
    %v184 = vsub.f32 %v182, %v183
    %v186 = vlaneseq
    %v187 = vshrl.u32 %v186, 7
    %v188 = vsub.s32 0, %v187
    %v189 = vrot.slane %v181, %v188
    %v191 = vmul.f32 %v160, %v189
    %v193 = vlaneseq
    %v194 = vshrl.u32 %v193, 7
    %v195 = vsub.s32 0, %v194
    %v196 = vrot.slane %v184, %v195
    %v198 = vadd.f32 %v191, %v196
    %v199 = vld [vmem:[#allocation7] sm:$0xff]
    %v200 = vld [vmem:[#allocation7 + $0x8] sm:$0xff]
    %v201 = vld [vmem:[#allocation7 + $0x10] sm:$0xff]
    %v202 = vld [vmem:[#allocation7 + $0x18] sm:$0xff]
    %v203 = vld [vmem:[#allocation7 + $0x20] sm:$0xff]
    %v204 = vld [vmem:[#allocation7 + $0x28] sm:$0xff]
    %v205 = vld [vmem:[#allocation7 + $0x30] sm:$0xff]
    %v206 = vld [vmem:[#allocation7 + $0x38] sm:$0xff]
    %v207 = vld [vmem:[#allocation7 + $0x40] sm:$0xff]
    %v208 = vld [vmem:[#allocation7 + $0x48] sm:$0xff]
    %v209 = vld [vmem:[#allocation7 + $0x50] sm:$0xff]
    %v210 = vld [vmem:[#allocation7 + $0x58] sm:$0xff]
    %v211 = vld [vmem:[#allocation7 + $0x60] sm:$0xff]
    %v212 = vld [vmem:[#allocation7 + $0x68] sm:$0xff]
    %v213 = vld [vmem:[#allocation7 + $0x70] sm:$0xff]
    %v214 = vld [vmem:[#allocation7 + $0x78] sm:$0xff]
    %v215 = vld [vmem:[%s6] sm:$0x1]
    %v217 = vlaneseq
    %v218 = vshrl.u32 %v217, 7
    %v219 = vsub.s32 0, %v218
    %v220 = vrot.slane %v215, %v219
    %222 = vmatprep.subr.mxu0 0.0
    %223 = vmatpush1.msra.mxu0 %v214
    %224 = vmatprep.subr.mxu0 0.0
    %225 = vmatpush1.msra.mxu0 %v213
    %226 = vmatprep.subr.mxu0 0.0
    %227 = vmatpush1.msra.mxu0 %v212
    %228 = vmatprep.subr.mxu0 0.0
    %229 = vmatpush1.msra.mxu0 %v211
    %230 = vmatprep.subr.mxu0 0.0
    %231 = vmatpush1.msra.mxu0 %v210
    %232 = vmatprep.subr.mxu0 0.0
    %233 = vmatpush1.msra.mxu0 %v209
    %234 = vmatprep.subr.mxu0 0.0
    %235 = vmatpush1.msra.mxu0 %v208
    %236 = vmatprep.subr.mxu0 0.0
    %237 = vmatpush1.msra.mxu0 %v207
    %238 = vmatprep.subr.mxu0 0.0
    %239 = vmatpush1.msra.mxu0 %v206
    %240 = vmatprep.subr.mxu0 0.0
    %241 = vmatpush1.msra.mxu0 %v205
    %242 = vmatprep.subr.mxu0 0.0
    %243 = vmatpush1.msra.mxu0 %v204
    %244 = vmatprep.subr.mxu0 0.0
    %245 = vmatpush1.msra.mxu0 %v203
    %246 = vmatprep.subr.mxu0 0.0
    %247 = vmatpush1.msra.mxu0 %v202
    %248 = vmatprep.subr.mxu0 0.0
    %249 = vmatpush1.msra.mxu0 %v201
    %250 = vmatprep.subr.mxu0 0.0
    %251 = vmatpush1.msra.mxu0 %v200
    %252 = vmatprep.subr.mxu0 0.0
    %253 = vmatpush1.msra.mxu0 %v199
    %254 = vmatprep.subr.mxu0 0.0
    %255 = vmatpush2.msra.mxu0 0.0
    %256 = vmatprep.subr.mxu0 0.0
    %257 = vmatpush2.msra.mxu0 0.0
    %258 = vmatprep.subr.mxu0 0.0
    %259 = vmatpush2.msra.mxu0 0.0
    %260 = vmatprep.subr.mxu0 0.0
    %261 = vmatpush2.msra.mxu0 0.0
    %262 = vmatprep.subr.mxu0 0.0
    %263 = vmatpush2.msra.mxu0 0.0
    %264 = vmatprep.subr.mxu0 0.0
    %265 = vmatpush2.msra.mxu0 0.0
    %266 = vmatprep.subr.mxu0 0.0
    %267 = vmatpush2.msra.mxu0 0.0
    %268 = vmatprep.subr.mxu0 0.0
    %269 = vmatpush2.msra.mxu0 0.0
    %270 = vmatprep.subr.mxu0 0.0
    %271 = vmatpush2.msra.mxu0 0.0
    %272 = vmatprep.subr.mxu0 0.0
    %273 = vmatpush2.msra.mxu0 0.0
    %274 = vmatprep.subr.mxu0 0.0
    %275 = vmatpush2.msra.mxu0 0.0
    %276 = vmatprep.subr.mxu0 0.0
    %277 = vmatpush2.msra.mxu0 0.0
    %278 = vmatprep.subr.mxu0 0.0
    %279 = vmatpush2.msra.mxu0 0.0
    %280 = vmatprep.subr.mxu0 0.0
    %281 = vmatpush2.msra.mxu0 0.0
    %282 = vmatprep.subr.mxu0 0.0
    %283 = vmatpush2.msra.mxu0 0.0
    %284 = vmatprep.subr.mxu0 0.0
    %285 = vmatpush2.msra.mxu0 0.0
    %286 = vmatprep.mubr.f32.mxu0 0.0
    %287 = vmatmul.mubr.f32.gmra.mxu0 %v198
    %v288 = vpop.f32.mrf.mxu0
    %v289 = vadd.f32 %v220, %v288
    %v290 = vpop.f32.mrf.mxu0
    %291 = vdwg.mxu0
    %v292 = vmax.f32 %v289, 0.0
    %293 = vst [vmem:[#allocation8] sm:$0xff] %v292
    // Predicated region
    $region42: #{tpu_custom_call.1} parent=1 // pred_check
      _
    $region43: #{tpu_custom_call.1} parent=1 // pred_check_branch
      %295 = sbr.rel (0) target = $region45
    $region44: #{tpu_custom_call.1} parent=1 // pred_region
      %s297 = ssub.s32 128, 128
      %298 = vsyncadd [#allocation4], %s297
      %s300 = sshll.u32 [#allocation8], 4
      %s301 = int_to_ptr.vmem [resolvable:$true] %s300
      %303 = dma.vmem_to_hbm [thread:$0]  %s301, 128, %s7, [#allocation4]
    $region45: #{tpu_custom_call.1} parent=1 // pred_fallthru
      _
    // Predicated region
    $region46: #{tpu_custom_call.1} parent=1 // pred_check
      _
    $region47: #{tpu_custom_call.1} parent=1 // pred_check_branch
      %305 = sbr.rel (0) target = $region49
    $region48: #{tpu_custom_call.1} parent=1 // pred_region
      %306 = dma.done [#allocation4], 128
    $region49: #{tpu_custom_call.1} parent=1 // pred_fallthru
      _
    %307 = vsyncpa [#allocation3], 1
    %308 = vsyncpa [#allocation6], 1
    %309 = vsyncpa [#allocation4], 1

</llo_original>
